<compile_context>
chip_gen: v7x
topology: tpu7x:2x2x1
jax: 0.10.0
libtpu: 0.0.40
codegen_flags: <defaults>
</compile_context>

<pallas_src>
import functools

import jax
import jax.numpy as jnp
from jax.experimental import pallas as pl
from jax.experimental.pallas import tpu as pltpu


def attention_block_kernel(g_ref, x_ref, wg_ref, wx_ref, bsum_ref,
                           wpsi_ref, bpsi_ref, o_ref):
    # pixels in lanes (last dim), channels in sublanes; activations stay in
    # their storage dtype (f32 or bf16) — the MXU accumulates in f32.
    g = g_ref[...]                                            # [f_g, tm]
    x = x_ref[...]                                            # [f_l, tm]

    # fused gate convs (1x1 conv + folded BN): Wg@g + Wx@x + (bg + bx)
    act = jnp.dot(wg_ref[...], g, preferred_element_type=jnp.float32)
    act = act + jnp.dot(wx_ref[...], x, preferred_element_type=jnp.float32)
    act = jnp.maximum(act + bsum_ref[...], 0.0)               # [f_int, tm] f32

    # psi: single-output-channel 1x1 conv as VPU mul + sublane (XLU) reduce,
    # avoiding a wasteful M=1 MXU matmul; result is naturally lane-dense.
    psi_logit = jnp.sum(act * wpsi_ref[...], axis=0, keepdims=True) \
        + bpsi_ref[0, 0]                                      # [1, tm]
    psi = jax.nn.sigmoid(psi_logit)

    # gate the skip-connection features x (sublane broadcast of psi over f_l)
    o_ref[...] = (psi * x.astype(jnp.float32)).astype(o_ref.dtype)


def fold_bn(w, b, gamma, beta, mean, var, eps=1e-5):
    """Fold eval-mode BatchNorm into a 1x1 conv (w: [out, in], b: [out])."""
    scale = gamma / jnp.sqrt(var + eps)
    w_f = w * scale[:, None]
    b_f = (b - mean) * scale + beta
    return w_f, b_f


def _pick_tile(hw, n_batch, tm_target):
    """Pixel-tile width: a multiple of 128, never degenerating to 128 from
    divisibility constraints (ragged tails are masked by Pallas)."""
    hw128 = ((hw + 127) // 128) * 128
    tm = max((min(tm_target, hw128) // 128) * 128, 128)

    # v7x megacore: prefer an even total grid-step count so both TensorCores
    # get equal work; only shrink the tile if it can stay >= 512 lanes wide.
    def n_steps(t):
        return n_batch * ((hw + t - 1) // t)

    if n_steps(tm) % 2 == 1:
        for cand in range(tm - 128, 511, -128):
            if n_steps(cand) % 2 == 0:
                tm = cand
                break
    return tm


def _vmem_limit_bytes(f_g, f_l, f_int, tm, act_bytes, w_bytes):
    """Scoped-VMEM request derived from the actual block sizes."""
    # double-buffered pixel blocks: g in, x in, out
    blocks = 2 * (f_g + 2 * f_l) * tm * act_bytes
    # weights/biases (constant index_map, but allocation is still 2-buffered)
    weights = 2 * f_int * (f_g + f_l + 2) * w_bytes + 8
    need = blocks + weights
    # 2x margin for compiler scratch / f32 temporaries; clamp so we never
    # over-reserve on v7x (64 MiB physical) nor drop below sane defaults.
    return int(min(max(2 * need + (4 << 20), 16 << 20), 48 << 20))


@functools.partial(jax.jit, static_argnames=("tm_target",))
def attention_block(g, x, params, tm_target=1024):
    """g: [N, f_g, H, W], x: [N, f_l, H, W] (NCHW).  Returns [N, f_l, H, W]."""
    N, f_g, H, W = g.shape
    f_l = x.shape[1]
    hw = H * W

    # fold BN into the convs (glue, not hot path)
    wg, bg = fold_bn(params["wg"], params["bg"], params["g_gamma"],
                     params["g_beta"], params["g_mean"], params["g_var"])
    wx, bx = fold_bn(params["wx"], params["bx"], params["x_gamma"],
                     params["x_beta"], params["x_mean"], params["x_var"])
    wpsi, bpsi = fold_bn(params["wpsi"], params["bpsi"], params["p_gamma"],
                         params["p_beta"], params["p_mean"], params["p_var"])
    f_int = wg.shape[0]

    # cast the matmul weights to the activation dtype (bf16 MXU path when the
    # surrounding model feeds bf16); biases / psi column stay f32 (f32 accum).
    wg_k = wg.astype(g.dtype)
    wx_k = wx.astype(x.dtype)
    b_sum = (bg + bx).reshape(f_int, 1).astype(jnp.float32)
    wpsi_col = wpsi.reshape(f_int, 1).astype(jnp.float32)
    bpsi2 = bpsi.reshape(1, 1).astype(jnp.float32)

    # keep NCHW; free reshape puts pixels on the lane axis — no pads, no slices
    g3 = g.reshape(N, f_g, hw)
    x3 = x.reshape(N, f_l, hw)

    tm = _pick_tile(hw, N, tm_target)
    grid = (N, pl.cdiv(hw, tm))

    act_bytes = max(g.dtype.itemsize, x.dtype.itemsize)
    vmem = _vmem_limit_bytes(f_g, f_l, f_int, tm, act_bytes, wg_k.dtype.itemsize)

    # NOTE: weight index_maps are constant so they are only DMA'd once; for
    # very deep stages they could additionally use pipeline_mode=pl.Buffered(1)
    # to reclaim the second buffer's VMEM.
    out3 = pl.pallas_call(
        attention_block_kernel,
        out_shape=jax.ShapeDtypeStruct((N, f_l, hw), x.dtype),
        grid_spec=pltpu.PrefetchScalarGridSpec(
            num_scalar_prefetch=0,
            grid=grid,
            in_specs=[
                pl.BlockSpec((None, f_g, tm), lambda n, i: (n, 0, i)),  # g pixels
                pl.BlockSpec((None, f_l, tm), lambda n, i: (n, 0, i)),  # x pixels
                pl.BlockSpec((f_int, f_g), lambda n, i: (0, 0)),        # Wg (folded)
                pl.BlockSpec((f_int, f_l), lambda n, i: (0, 0)),        # Wx (folded)
                pl.BlockSpec((f_int, 1), lambda n, i: (0, 0)),          # bg+bx
                pl.BlockSpec((f_int, 1), lambda n, i: (0, 0)),          # Wpsi column
                pl.BlockSpec(memory_space=pltpu.MemorySpace.SMEM),      # bpsi scalar
            ],
            out_specs=pl.BlockSpec((None, f_l, tm), lambda n, i: (n, 0, i)),
        ),
        compiler_params=pltpu.CompilerParams(
            dimension_semantics=("parallel", "parallel"),
            vmem_limit_bytes=vmem),
    )(g3, x3, wg_k, wx_k, b_sum, wpsi_col, bpsi2)

    return out3.reshape(N, f_l, H, W)


def make_params(key, f_g, f_l, f_int):
    ks = jax.random.split(key, 16)
    return {
        # conv weights [out, in] (1x1 kernels squeezed), biases [out]
        "wg": jax.random.normal(ks[0], (f_int, f_g), jnp.float32) * 0.2,
        "bg": jax.random.normal(ks[1], (f_int,), jnp.float32) * 0.1,
        "wx": jax.random.normal(ks[2], (f_int, f_l), jnp.float32) * 0.2,
        "bx": jax.random.normal(ks[3], (f_int,), jnp.float32) * 0.1,
        "wpsi": jax.random.normal(ks[4], (1, f_int), jnp.float32) * 0.2,
        "bpsi": jax.random.normal(ks[5], (1,), jnp.float32) * 0.1,
        # BatchNorm (eval mode) stats / affine params
        "g_gamma": jax.random.uniform(ks[6], (f_int,), jnp.float32, 0.5, 1.5),
        "g_beta": jax.random.normal(ks[7], (f_int,), jnp.float32) * 0.1,
        "g_mean": jax.random.normal(ks[8], (f_int,), jnp.float32) * 0.1,
        "g_var": jax.random.uniform(ks[9], (f_int,), jnp.float32, 0.5, 1.5),
        "x_gamma": jax.random.uniform(ks[10], (f_int,), jnp.float32, 0.5, 1.5),
        "x_beta": jax.random.normal(ks[11], (f_int,), jnp.float32) * 0.1,
        "x_mean": jax.random.normal(ks[12], (f_int,), jnp.float32) * 0.1,
        "x_var": jax.random.uniform(ks[13], (f_int,), jnp.float32, 0.5, 1.5),
        "p_gamma": jnp.array([1.2], jnp.float32),
        "p_beta": jnp.array([0.05], jnp.float32),
        "p_mean": jnp.array([0.02], jnp.float32),
        "p_var": jnp.array([0.9], jnp.float32),
    }


def reference(g, x, params):
    """Plain-JAX reference (same folded-BN eval-mode semantics)."""
    wg, bg = fold_bn(params["wg"], params["bg"], params["g_gamma"],
                     params["g_beta"], params["g_mean"], params["g_var"])
    wx, bx = fold_bn(params["wx"], params["bx"], params["x_gamma"],
                     params["x_beta"], params["x_mean"], params["x_var"])
    wpsi, bpsi = fold_bn(params["wpsi"], params["bpsi"], params["p_gamma"],
                         params["p_beta"], params["p_mean"], params["p_var"])
    g1 = jnp.einsum("nchw,oc->nohw", g, wg) + bg[None, :, None, None]
    x1 = jnp.einsum("nchw,oc->nohw", x, wx) + bx[None, :, None, None]
    a = jnp.maximum(g1 + x1, 0.0)
    psi = jax.nn.sigmoid(jnp.einsum("nchw,oc->nohw", a, wpsi)
                         + bpsi[None, :, None, None])
    return psi * x


if __name__ == "__main__":
    N, f_g, f_l, f_int = 2, 4, 4, 8
    key = jax.random.PRNGKey(0)
    kg, kx, kp = jax.random.split(key, 3)
    params = make_params(kp, f_g, f_l, f_int)

    # 1) f32, 128-aligned spatial extent
    H, W = 16, 16
    g = jax.random.normal(kg, (N, f_g, H, W), jnp.float32)
    x = jax.random.normal(kx, (N, f_l, H, W), jnp.float32)
    out = jax.block_until_ready(attention_block(g, x, params))
    ref = reference(g, x, params)
    assert out.shape == (N, f_l, H, W)
    assert jnp.allclose(out, ref, atol=1e-5, rtol=1e-5), "f32 mismatch"

    # 2) f32, ragged pixel tail (hw=384, tm=256 -> masked last block, no padding)
    H2, W2 = 16, 24
    g2 = jax.random.normal(kg, (N, f_g, H2, W2), jnp.float32)
    x2 = jax.random.normal(kx, (N, f_l, H2, W2), jnp.float32)
    out2 = jax.block_until_ready(attention_block(g2, x2, params, tm_target=256))
    ref2 = reference(g2, x2, params)
    assert jnp.allclose(out2, ref2, atol=1e-5, rtol=1e-5), "ragged mismatch"

    # 3) bf16 activations end-to-end (HBM-bound kernel: halves bytes moved)
    gb = g.astype(jnp.bfloat16)
    xb = x.astype(jnp.bfloat16)
    outb = jax.block_until_ready(attention_block(gb, xb, params))
    refb = reference(gb.astype(jnp.float32), xb.astype(jnp.float32), params)
    assert outb.dtype == jnp.bfloat16
    assert jnp.allclose(outb.astype(jnp.float32), refb, atol=1e-1, rtol=1e-1), \
        "bf16 mismatch"

    print("KERNEL_OK")
</pallas_src>

<mosaic_0001>
module attributes {stable_mosaic.version = 11 : i64} {
  func.func @attention_block_kernel(%arg0: i32, %arg1: i32, %arg2: memref<1x4x256xf32, #tpu.memory_space<vmem>>, %arg3: memref<1x4x256xf32, #tpu.memory_space<vmem>>, %arg4: memref<8x4xf32, #tpu.memory_space<vmem>>, %arg5: memref<8x4xf32, #tpu.memory_space<vmem>>, %arg6: memref<8x1xf32, #tpu.memory_space<vmem>>, %arg7: memref<8x1xf32, #tpu.memory_space<vmem>>, %arg8: memref<1x1xf32, #tpu.memory_space<smem>>, %arg9: memref<1x4x256xf32, #tpu.memory_space<vmem>>) attributes {dimension_semantics = [#tpu.dimension_semantics<parallel>, #tpu.dimension_semantics<parallel>], iteration_bounds = array<i64: 2, 1>, scalar_prefetch = 0 : i64, scratch_operands = 0 : i64, tpu.core_type = #tpu.core_type<tc>, window_params = [{transform_indices = @transform_0, window_bounds = array<i64: 1, 4, 256>}, {transform_indices = @transform_1, window_bounds = array<i64: 1, 4, 256>}, {pipeline_mode = #tpu.pipeline_mode<synchronous>, transform_indices = @transform_2, window_bounds = array<i64: 8, 4>}, {pipeline_mode = #tpu.pipeline_mode<synchronous>, transform_indices = @transform_3, window_bounds = array<i64: 8, 4>}, {pipeline_mode = #tpu.pipeline_mode<synchronous>, transform_indices = @transform_4, window_bounds = array<i64: 8, 1>}, {pipeline_mode = #tpu.pipeline_mode<synchronous>, transform_indices = @transform_5, window_bounds = array<i64: 8, 1>}, {transform_indices = @transform_6, window_bounds = array<i64: 1, 1>}, {transform_indices = @transform_7, window_bounds = array<i64: 1, 4, 256>}]} {
    %c0 = arith.constant 0 : index
    %c0_0 = arith.constant 0 : index
    %c0_1 = arith.constant 0 : index
    %0 = vector.load %arg2[%c0, %c0_0, %c0_1] : memref<1x4x256xf32, #tpu.memory_space<vmem>>, vector<1x4x256xf32>
    %1 = vector.shape_cast %0 : vector<1x4x256xf32> to vector<4x256xf32>
    %c0_2 = arith.constant 0 : index
    %c0_3 = arith.constant 0 : index
    %c0_4 = arith.constant 0 : index
    %2 = vector.load %arg3[%c0_2, %c0_3, %c0_4] : memref<1x4x256xf32, #tpu.memory_space<vmem>>, vector<1x4x256xf32>
    %3 = vector.shape_cast %2 : vector<1x4x256xf32> to vector<4x256xf32>
    %c0_5 = arith.constant 0 : index
    %c0_6 = arith.constant 0 : index
    %4 = vector.load %arg4[%c0_5, %c0_6] : memref<8x4xf32, #tpu.memory_space<vmem>>, vector<8x4xf32>
    %cst = arith.constant dense<0.000000e+00> : vector<8x256xf32>
    %5 = tpu.matmul %4, %1, %cst {dimension_numbers = #tpu.dot_dimension_numbers<[1], [0], [0], [1], [0, 0, 1, 1], [], []>} : vector<8x4xf32>, vector<4x256xf32>, vector<8x256xf32> -> vector<8x256xf32>
    %c0_7 = arith.constant 0 : index
    %c0_8 = arith.constant 0 : index
    %6 = vector.load %arg5[%c0_7, %c0_8] : memref<8x4xf32, #tpu.memory_space<vmem>>, vector<8x4xf32>
    %cst_9 = arith.constant dense<0.000000e+00> : vector<8x256xf32>
    %7 = tpu.matmul %6, %3, %cst_9 {dimension_numbers = #tpu.dot_dimension_numbers<[1], [0], [0], [1], [0, 0, 1, 1], [], []>} : vector<8x4xf32>, vector<4x256xf32>, vector<8x256xf32> -> vector<8x256xf32>
    %8 = arith.addf %5, %7 : vector<8x256xf32>
    %c0_10 = arith.constant 0 : index
    %c0_11 = arith.constant 0 : index
    %9 = vector.load %arg6[%c0_10, %c0_11] : memref<8x1xf32, #tpu.memory_space<vmem>>, vector<8x1xf32>
    %10 = vector.broadcast %9 : vector<8x1xf32> to vector<8x256xf32>
    %11 = arith.addf %8, %10 : vector<8x256xf32>
    %cst_12 = arith.constant 0.000000e+00 : f32
    %12 = vector.broadcast %cst_12 : f32 to vector<8x256xf32>
    %13 = arith.maximumf %11, %12 : vector<8x256xf32>
    %c0_13 = arith.constant 0 : index
    %c0_14 = arith.constant 0 : index
    %14 = vector.load %arg7[%c0_13, %c0_14] : memref<8x1xf32, #tpu.memory_space<vmem>>, vector<8x1xf32>
    %15 = vector.broadcast %14 : vector<8x1xf32> to vector<8x256xf32>
    %16 = arith.mulf %13, %15 : vector<8x256xf32>
    %cst_15 = arith.constant dense<0.000000e+00> : vector<256xf32>
    %17 = vector.multi_reduction <add>, %16, %cst_15 [0] : vector<8x256xf32> to vector<256xf32>
    %18 = vector.shape_cast %17 : vector<256xf32> to vector<1x256xf32>
    %c0_16 = arith.constant 0 : index
    %c0_17 = arith.constant 0 : index
    %19 = memref.load %arg8[%c0_16, %c0_17] : memref<1x1xf32, #tpu.memory_space<smem>>
    %20 = vector.broadcast %19 : f32 to vector<1x256xf32>
    %21 = arith.addf %18, %20 : vector<1x256xf32>
    %22 = arith.negf %21 : vector<1x256xf32>
    %23 = math.exp %22 : vector<1x256xf32>
    %cst_18 = arith.constant 1.000000e+00 : f32
    %24 = vector.broadcast %cst_18 : f32 to vector<1x256xf32>
    %25 = arith.addf %24, %23 : vector<1x256xf32>
    %26 = arith.divf %24, %25 : vector<1x256xf32>
    %27 = vector.broadcast %26 : vector<1x256xf32> to vector<4x256xf32>
    %28 = arith.mulf %27, %3 : vector<4x256xf32>
    %c0_19 = arith.constant 0 : index
    %c0_20 = arith.constant 0 : index
    %c0_21 = arith.constant 0 : index
    %29 = vector.load %arg9[%c0_19, %c0_20, %c0_21] : memref<1x4x256xf32, #tpu.memory_space<vmem>>, vector<1x4x256xf32>
    %30 = vector.shape_cast %29 : vector<1x4x256xf32> to vector<4x256xf32>
    %31 = vector.shape_cast %28 : vector<4x256xf32> to vector<1x4x256xf32>
    tpu.vector_store %arg9[%c0_19, %c0_20, %c0_21], %31 {strides = array<i32>} : memref<1x4x256xf32, #tpu.memory_space<vmem>>, vector<1x4x256xf32>,
    return
  }
  func.func @transform_0(%arg0: i32, %arg1: i32) -> (i32, i32, i32) {
    %c0_i32 = arith.constant 0 : i32
    %c0_i32_0 = arith.constant 0 : i32
    return %arg0, %c0_i32, %arg1 : i32, i32, i32
  }
  func.func @transform_1(%arg0: i32, %arg1: i32) -> (i32, i32, i32) {
    %c0_i32 = arith.constant 0 : i32
    %c0_i32_0 = arith.constant 0 : i32
    return %arg0, %c0_i32, %arg1 : i32, i32, i32
  }
  func.func @transform_2(%arg0: i32, %arg1: i32) -> (i32, i32) {
    %c0_i32 = arith.constant 0 : i32
    %c0_i32_0 = arith.constant 0 : i32
    %c0_i32_1 = arith.constant 0 : i32
    return %c0_i32, %c0_i32_0 : i32, i32
  }
  func.func @transform_3(%arg0: i32, %arg1: i32) -> (i32, i32) {
    %c0_i32 = arith.constant 0 : i32
    %c0_i32_0 = arith.constant 0 : i32
    %c0_i32_1 = arith.constant 0 : i32
    return %c0_i32, %c0_i32_0 : i32, i32
  }
  func.func @transform_4(%arg0: i32, %arg1: i32) -> (i32, i32) {
    %c0_i32 = arith.constant 0 : i32
    %c0_i32_0 = arith.constant 0 : i32
    %c0_i32_1 = arith.constant 0 : i32
    return %c0_i32, %c0_i32_0 : i32, i32
  }
  func.func @transform_5(%arg0: i32, %arg1: i32) -> (i32, i32) {
    %c0_i32 = arith.constant 0 : i32
    %c0_i32_0 = arith.constant 0 : i32
    %c0_i32_1 = arith.constant 0 : i32
    return %c0_i32, %c0_i32_0 : i32, i32
  }
  func.func @transform_6(%arg0: i32, %arg1: i32) -> (i32, i32) {
    %c0_i32 = arith.constant 0 : i32
    %c0_i32_0 = arith.constant 0 : i32
    %c0_i32_1 = arith.constant 0 : i32
    return %c0_i32, %c0_i32_0 : i32, i32
  }
  func.func @transform_7(%arg0: i32, %arg1: i32) -> (i32, i32, i32) {
    %c0_i32 = arith.constant 0 : i32
    %c0_i32_0 = arith.constant 0 : i32
    return %arg0, %c0_i32, %arg1 : i32, i32, i32
  }
}

</mosaic_0001>

<llo_original>
// kernel: attention_block.1
$region0: #{attention_block.1}
  #allocation0 [shape = 'u32[]', space=smem, size = 0x4, offset = 0x4, fixed_abs, tag = 'smem constant byte address 0x4 - core index']
  #allocation1 [shape = 'u32[144,128]{1,0:T(1,128)}', space=vmem, size = 0x12000, scoped, tag = 'internal scratch']
  #allocation2 [shape = 'f32[1,1]{1,0:T(1,128)S(6)}', space=smem, size = 0x200, scoped, tag = 'scoped memory for attention_block.1']
  %s0 = inlined_call_operand.vmem [shape: f32[2,4,256], index: 0, kind: input, shape index: {}]
  %s1 = inlined_call_operand.vmem [shape: f32[2,4,256], index: 1, kind: input, shape index: {}]
  %s2 = inlined_call_operand.vmem [shape: f32[8,4], index: 2, kind: input, shape index: {}]
  %s3 = inlined_call_operand.vmem [shape: f32[8,4], index: 3, kind: input, shape index: {}]
  %s4 = inlined_call_operand.vmem [shape: f32[8,1], index: 4, kind: input, shape index: {}]
  %s5 = inlined_call_operand.vmem [shape: f32[8,1], index: 5, kind: input, shape index: {}]
  %s6 = inlined_call_operand.<no memory space> [shape: f32[1,1], index: 6, kind: input, shape index: {}]
  %s7 = inlined_call_operand.vmem [shape: f32[2,4,256], index: 7, kind: output, shape index: {}]
  %s8 = sld [smem:[#allocation0]]
  $region61: #{attention_block.1} parent=0
    _
  %s10 = ssub.s32 1, %s8
  %s11 = scalar_select 0, %s10, %s8
  %12 = sst [smem:[#allocation2]] %s6
  loop: start=0, step=1, limit=4
  $region2: #{attention_block.1} parent=0 // loop_pre_header
    _
  $region3: #{attention_block.1} parent=0 // loop_header
    %s14 = sphi 0, %s18
    %p15 = scmp.ge.s32.totalorder %s14, 4
    %s21 = sphi 0, %s33
    %s22 = sphi 0, %s29
    %s23 = sphi 0, %s21
    %s24 = sphi 0, %s22
    %s25 = sphi 0, %s23
    %s26 = sphi 0, %s24
    %s38 = sphi 0, %s40
    %s41 = sphi 0, %s38
    %s42 = sphi 0, %s41
    %s58 = sphi 0, %s42
    %s66 = sphi 0, %s68
    %s69 = sphi 0, %s66
    %s70 = sphi 0, %s69
    %s86 = sphi 0, %s70
    %s90 = sphi 0, %s90
    %s92 = sphi 0, %s90
    %s93 = sphi 0, %s92
    %s107 = sphi 0, %s93
    %s111 = sphi 0, %s111
    %s113 = sphi 0, %s111
    %s114 = sphi 0, %s113
    %s128 = sphi 0, %s114
    %s132 = sphi 0, %s132
    %s134 = sphi 0, %s132
    %s135 = sphi 0, %s134
    %s149 = sphi 0, %s135
    %s153 = sphi 0, %s153
    %s155 = sphi 0, %s153
    %s156 = sphi 0, %s155
    %s170 = sphi 0, %s156
    %s174 = sphi 0, %s174
    %s176 = sphi 0, %s174
    %s177 = sphi 0, %s176
    %s191 = sphi 0, %s177
    %s199 = sphi 0, %s201
    %s202 = sphi 0, %s199
    %s203 = sphi 0, %s202
    %s219 = sphi 0, %s203
  $region4: #{attention_block.1} parent=0 // loop_header_branch
    %17 = sbr.rel (%p15) target = $region8
  $region5: #{attention_block.1} parent=0 // loop_body
    %s19 = ssub.s32 %s14, 1
    %s20 = ssub.s32 %s14, 2
    %s27 = sadd.s32 1, %s22
    %p28 = scmp.ge.s32.totalorder %s27, 1
    %s29 = scalar_select %p28, 0, %s27
    %s30 = sadd.s32 1, %s21
    %s31 = scalar_select %p28, %s30, %s21
    %p32 = scmp.ge.s32.totalorder %s31, 2
    %s33 = scalar_select %p32, 0, %s31
    %s34 = ssub.s32 %s21, %s33
    %s35 = ssub.s32 %s22, %s29
    %s36 = sor.u32 %s34, %s35
    %p37 = scmp.eq.s32.totalorder %s36, 0
    %s39 = sadd.s32 %s38, 1
    %s40 = scalar_select %p37, %s38, %s39
    %p43 = pneg %p37
    %p44 = scmp.eq.s32.totalorder %s14, 1
    %p45 = por %p43, %p44
    %p46 = scmp.ne.s32.totalorder %s38, %s41
    %p47 = scmp.eq.s32.totalorder %s14, 0
    %p48 = por %p46, %p47
    %p49 = scmp.ne.s32.totalorder %s38, %s41
    %p50 = scmp.eq.s32.totalorder %s19, 1
    %p51 = por %p49, %p50
    %p52 = scmp.ne.s32.totalorder %s41, %s42
    %p53 = scmp.eq.s32.totalorder %s19, 0
    %p54 = por %p52, %p53
    %p55 = scmp.ne.s32.totalorder %s41, %s42
    %p56 = scmp.eq.s32.totalorder %s20, 1
    %p57 = por %p55, %p56
    %p59 = scmp.ne.s32.totalorder %s42, %s58
    %p60 = scmp.eq.s32.totalorder %s20, 0
    %p61 = por %p59, %p60
    %s62 = ssub.s32 %s21, %s33
    %s63 = ssub.s32 %s22, %s29
    %s64 = sor.u32 %s62, %s63
    %p65 = scmp.eq.s32.totalorder %s64, 0
    %s67 = sadd.s32 %s66, 1
    %s68 = scalar_select %p65, %s66, %s67
    %p71 = pneg %p65
    %p72 = scmp.eq.s32.totalorder %s14, 1
    %p73 = por %p71, %p72
    %p74 = scmp.ne.s32.totalorder %s66, %s69
    %p75 = scmp.eq.s32.totalorder %s14, 0
    %p76 = por %p74, %p75
    %p77 = scmp.ne.s32.totalorder %s66, %s69
    %p78 = scmp.eq.s32.totalorder %s19, 1
    %p79 = por %p77, %p78
    %p80 = scmp.ne.s32.totalorder %s69, %s70
    %p81 = scmp.eq.s32.totalorder %s19, 0
    %p82 = por %p80, %p81
    %p83 = scmp.ne.s32.totalorder %s69, %s70
    %p84 = scmp.eq.s32.totalorder %s20, 1
    %p85 = por %p83, %p84
    %p87 = scmp.ne.s32.totalorder %s70, %s86
    %p88 = scmp.eq.s32.totalorder %s20, 0
    %p89 = por %p87, %p88
    %s91 = sadd.s32 %s90, 1
    %p94 = scmp.eq.s32.totalorder %s14, 1
    %p95 = scmp.ne.s32.totalorder %s90, %s92
    %p96 = scmp.eq.s32.totalorder %s14, 0
    %p97 = por %p95, %p96
    %p98 = scmp.ne.s32.totalorder %s90, %s92
    %p99 = scmp.eq.s32.totalorder %s19, 1
    %p100 = por %p98, %p99
    %p101 = scmp.ne.s32.totalorder %s92, %s93
    %p102 = scmp.eq.s32.totalorder %s19, 0
    %p103 = por %p101, %p102
    %p104 = scmp.ne.s32.totalorder %s92, %s93
    %p105 = scmp.eq.s32.totalorder %s20, 1
    %p106 = por %p104, %p105
    %p108 = scmp.ne.s32.totalorder %s93, %s107
    %p109 = scmp.eq.s32.totalorder %s20, 0
    %p110 = por %p108, %p109
    %s112 = sadd.s32 %s111, 1
    %p115 = scmp.eq.s32.totalorder %s14, 1
    %p116 = scmp.ne.s32.totalorder %s111, %s113
    %p117 = scmp.eq.s32.totalorder %s14, 0
    %p118 = por %p116, %p117
    %p119 = scmp.ne.s32.totalorder %s111, %s113
    %p120 = scmp.eq.s32.totalorder %s19, 1
    %p121 = por %p119, %p120
    %p122 = scmp.ne.s32.totalorder %s113, %s114
    %p123 = scmp.eq.s32.totalorder %s19, 0
    %p124 = por %p122, %p123
    %p125 = scmp.ne.s32.totalorder %s113, %s114
    %p126 = scmp.eq.s32.totalorder %s20, 1
    %p127 = por %p125, %p126
    %p129 = scmp.ne.s32.totalorder %s114, %s128
    %p130 = scmp.eq.s32.totalorder %s20, 0
    %p131 = por %p129, %p130
    %s133 = sadd.s32 %s132, 1
    %p136 = scmp.eq.s32.totalorder %s14, 1
    %p137 = scmp.ne.s32.totalorder %s132, %s134
    %p138 = scmp.eq.s32.totalorder %s14, 0
    %p139 = por %p137, %p138
    %p140 = scmp.ne.s32.totalorder %s132, %s134
    %p141 = scmp.eq.s32.totalorder %s19, 1
    %p142 = por %p140, %p141
    %p143 = scmp.ne.s32.totalorder %s134, %s135
    %p144 = scmp.eq.s32.totalorder %s19, 0
    %p145 = por %p143, %p144
    %p146 = scmp.ne.s32.totalorder %s134, %s135
    %p147 = scmp.eq.s32.totalorder %s20, 1
    %p148 = por %p146, %p147
    %p150 = scmp.ne.s32.totalorder %s135, %s149
    %p151 = scmp.eq.s32.totalorder %s20, 0
    %p152 = por %p150, %p151
    %s154 = sadd.s32 %s153, 1
    %p157 = scmp.eq.s32.totalorder %s14, 1
    %p158 = scmp.ne.s32.totalorder %s153, %s155
    %p159 = scmp.eq.s32.totalorder %s14, 0
    %p160 = por %p158, %p159
    %p161 = scmp.ne.s32.totalorder %s153, %s155
    %p162 = scmp.eq.s32.totalorder %s19, 1
    %p163 = por %p161, %p162
    %p164 = scmp.ne.s32.totalorder %s155, %s156
    %p165 = scmp.eq.s32.totalorder %s19, 0
    %p166 = por %p164, %p165
    %p167 = scmp.ne.s32.totalorder %s155, %s156
    %p168 = scmp.eq.s32.totalorder %s20, 1
    %p169 = por %p167, %p168
    %p171 = scmp.ne.s32.totalorder %s156, %s170
    %p172 = scmp.eq.s32.totalorder %s20, 0
    %p173 = por %p171, %p172
    %s175 = sadd.s32 %s174, 1
    %p178 = scmp.eq.s32.totalorder %s14, 1
    %p179 = scmp.ne.s32.totalorder %s174, %s176
    %p180 = scmp.eq.s32.totalorder %s14, 0
    %p181 = por %p179, %p180
    %p182 = scmp.ne.s32.totalorder %s174, %s176
    %p183 = scmp.eq.s32.totalorder %s19, 1
    %p184 = por %p182, %p183
    %p185 = scmp.ne.s32.totalorder %s176, %s177
    %p186 = scmp.eq.s32.totalorder %s19, 0
    %p187 = por %p185, %p186
    %p188 = scmp.ne.s32.totalorder %s176, %s177
    %p189 = scmp.eq.s32.totalorder %s20, 1
    %p190 = por %p188, %p189
    %p192 = scmp.ne.s32.totalorder %s177, %s191
    %p193 = scmp.eq.s32.totalorder %s20, 0
    %p194 = por %p192, %p193
    %s195 = ssub.s32 %s21, %s33
    %s196 = ssub.s32 %s22, %s29
    %s197 = sor.u32 %s195, %s196
    %p198 = scmp.eq.s32.totalorder %s197, 0
    %s200 = sadd.s32 %s199, 1
    %s201 = scalar_select %p198, %s199, %s200
    %p204 = pneg %p198
    %p205 = scmp.eq.s32.totalorder %s14, 1
    %p206 = por %p204, %p205
    %p207 = scmp.ne.s32.totalorder %s199, %s202
    %p208 = scmp.eq.s32.totalorder %s14, 0
    %p209 = por %p207, %p208
    %p210 = scmp.ne.s32.totalorder %s199, %s202
    %p211 = scmp.eq.s32.totalorder %s19, 1
    %p212 = por %p210, %p211
    %p213 = scmp.ne.s32.totalorder %s202, %s203
    %p214 = scmp.eq.s32.totalorder %s19, 0
    %p215 = por %p213, %p214
    %p216 = scmp.ne.s32.totalorder %s202, %s203
    %p217 = scmp.eq.s32.totalorder %s20, 1
    %p218 = por %p216, %p217
    %p220 = scmp.ne.s32.totalorder %s203, %s219
    %p221 = scmp.eq.s32.totalorder %s20, 0
    %p222 = por %p220, %p221
    %p223 = scmp.le.s32.totalorder 1, %s14
    %p224 = scmp.lt.s32.totalorder %s14, 3
    %p225 = pnand %p223, %p224
    %p226 = pneg %p225
    // Predicated region
    $region9: #{attention_block.1} parent=5 // pred_check
      _
    $region10: #{attention_block.1} parent=5 // pred_check_branch
      %228 = sbr.rel (%p225) target = $region12
    $region11: #{attention_block.1} parent=5 // pred_region
      %s229 = ssub.s32 %s14, 1
      // Predicated region
      $region13: #{attention_block.1} parent=11 // pred_check
        %p230 = pneg %p103
      $region14: #{attention_block.1} parent=11 // pred_check_branch
        %232 = sbr.rel (%p230) target = $region16
      $region15: #{attention_block.1} parent=11 // pred_region
        _
      $region16: #{attention_block.1} parent=11 // pred_fallthru
        _
      // Predicated region
      $region17: #{attention_block.1} parent=11 // pred_check
        %p233 = pneg %p124
      $region18: #{attention_block.1} parent=11 // pred_check_branch
        %235 = sbr.rel (%p233) target = $region20
      $region19: #{attention_block.1} parent=11 // pred_region
        _
      $region20: #{attention_block.1} parent=11 // pred_fallthru
        _
      // Predicated region
      $region21: #{attention_block.1} parent=11 // pred_check
        %p236 = pneg %p145
      $region22: #{attention_block.1} parent=11 // pred_check_branch
        %238 = sbr.rel (%p236) target = $region24
      $region23: #{attention_block.1} parent=11 // pred_region
        _
      $region24: #{attention_block.1} parent=11 // pred_fallthru
        _
      // Predicated region
      $region25: #{attention_block.1} parent=11 // pred_check
        %p239 = pneg %p166
      $region26: #{attention_block.1} parent=11 // pred_check_branch
        %241 = sbr.rel (%p239) target = $region28
      $region27: #{attention_block.1} parent=11 // pred_region
        _
      $region28: #{attention_block.1} parent=11 // pred_fallthru
        _
      // Predicated region
      $region29: #{attention_block.1} parent=11 // pred_check
        %p242 = pneg %p187
      $region30: #{attention_block.1} parent=11 // pred_check_branch
        %244 = sbr.rel (%p242) target = $region32
      $region31: #{attention_block.1} parent=11 // pred_region
        _
      $region32: #{attention_block.1} parent=11 // pred_fallthru
        _
    $region12: #{attention_block.1} parent=5 // pred_fallthru
      _
    %p245 = scmp.lt.s32.totalorder %s14, 2
    // Predicated region
    $region33: #{attention_block.1} parent=5 // pred_check
      %p246 = pneg %p245
    $region34: #{attention_block.1} parent=5 // pred_check_branch
      %248 = sbr.rel (%p246) target = $region36
    $region35: #{attention_block.1} parent=5 // pred_region
      // Predicated region
      $region37: #{attention_block.1} parent=35 // pred_check
        %p249 = pneg %p48
      $region38: #{attention_block.1} parent=35 // pred_check_branch
        %251 = sbr.rel (%p249) target = $region40
      $region39: #{attention_block.1} parent=35 // pred_region
        %s252 = smul.u32 2, %s22
        %p253 = scmp.lt.s32.totalorder %s21, 1
        %s254 = scalar_select %p253, %s21, 1
        %p255 = scmp.lt.s32.totalorder %s252, 1
        %s256 = scalar_select %p255, %s252, 1
        %s257 = smul.addr %s254, 2
        %s258 = sadd.s32 %s256, %s257
        %s259 = smul.addr %s258, 4
        %s260 = scalar_lea.vmem %s0, %s259
        %s261 = smul.u32 2, %s22
      $region40: #{attention_block.1} parent=35 // pred_fallthru
        _
      // Predicated region
      $region41: #{attention_block.1} parent=35 // pred_check
        %p262 = pneg %p76
      $region42: #{attention_block.1} parent=35 // pred_check_branch
        %264 = sbr.rel (%p262) target = $region44
      $region43: #{attention_block.1} parent=35 // pred_region
        %s265 = smul.u32 2, %s22
        %p266 = scmp.lt.s32.totalorder %s21, 1
        %s267 = scalar_select %p266, %s21, 1
        %p268 = scmp.lt.s32.totalorder %s265, 1
        %s269 = scalar_select %p268, %s265, 1
        %s270 = smul.addr %s267, 2
        %s271 = sadd.s32 %s269, %s270
        %s272 = smul.addr %s271, 4
        %s273 = scalar_lea.vmem %s1, %s272
        %s274 = smul.u32 2, %s22
      $region44: #{attention_block.1} parent=35 // pred_fallthru
        _
    $region36: #{attention_block.1} parent=5 // pred_fallthru
      _
    %p275 = scmp.le.s32.totalorder 1, %s14
    %p276 = scmp.lt.s32.totalorder %s14, 3
    %p277 = pnand %p275, %p276
    %p278 = pneg %p277
    // Predicated region
    $region45: #{attention_block.1} parent=5 // pred_check
      _
    $region46: #{attention_block.1} parent=5 // pred_check_branch
      %280 = sbr.rel (%p277) target = $region48
    $region47: #{attention_block.1} parent=5 // pred_region
      %s281 = ssub.s32 %s14, 1
      %s282 = smul.u32 2, %s24
      %p283 = scmp.lt.s32.totalorder %s23, 1
      %s284 = scalar_select %p283, %s23, 1
      %p285 = scmp.lt.s32.totalorder %s282, 1
      %s286 = scalar_select %p285, %s282, 1
      %s287 = smul.addr %s284, 2
      %s288 = sadd.s32 %s286, %s287
      %s289 = smul.addr %s288, 4
      %s290 = scalar_lea.vmem %s0, %s289
      %p291 = pneg %p54
      %p292 = pneg %p51
      %s293 = smul.u32 2, %s24
      %p294 = scmp.lt.s32.totalorder %s23, 1
      %s295 = scalar_select %p294, %s23, 1
      %p296 = scmp.lt.s32.totalorder %s293, 1
      %s297 = scalar_select %p296, %s293, 1
      %s298 = smul.addr %s295, 2
      %s299 = sadd.s32 %s297, %s298
      %s300 = smul.addr %s299, 4
      %s301 = scalar_lea.vmem %s1, %s300
      %p302 = pneg %p82
      %p303 = pneg %p79
      %p304 = pneg %p103
      %p305 = pneg %p100
      %p306 = pneg %p124
      %p307 = pneg %p121
      %p308 = pneg %p145
      %p309 = pneg %p142
      %p310 = pneg %p166
      %p311 = pneg %p163
      %p312 = pneg %p187
      %p313 = pneg %p184
      %p314 = pneg %p215
      %p315 = pneg %p212
      %s316 = smul.u32 2, %s24
      %p317 = scmp.lt.s32.totalorder %s23, 1
      %s318 = scalar_select %p317, %s23, 1
      %p319 = scmp.lt.s32.totalorder %s316, 1
      %s320 = scalar_select %p319, %s316, 1
      %s321 = smul.addr %s318, 2
      %s322 = sadd.s32 %s320, %s321
      %s323 = smul.addr %s322, 4
      %s324 = scalar_lea.vmem %s7, %s323
      %s325 = smul.u32 2, %s24
      %p326 = scmp.lt.s32.totalorder %s23, 1
      %s327 = scalar_select %p326, %s23, 1
      %p328 = scmp.lt.s32.totalorder %s325, 1
      %s329 = scalar_select %p328, %s325, 1
      %s330 = smul.addr %s327, 2
      %s331 = sadd.s32 %s329, %s330
      %s332 = smul.addr %s331, 4
      %s333 = scalar_lea.vmem %s0, %s332
      %s334 = smul.u32 2, %s24
      %s335 = smul.u32 2, %s24
      %p336 = scmp.lt.s32.totalorder %s23, 1
      %s337 = scalar_select %p336, %s23, 1
      %p338 = scmp.lt.s32.totalorder %s335, 1
      %s339 = scalar_select %p338, %s335, 1
      %s340 = smul.addr %s337, 2
      %s341 = sadd.s32 %s339, %s340
      %s342 = smul.addr %s341, 4
      %s343 = scalar_lea.vmem %s1, %s342
      %s344 = smul.u32 2, %s24
      %s345 = smul.u32 2, %s24
      %p346 = scmp.lt.s32.totalorder %s23, 1
      %s347 = scalar_select %p346, %s23, 1
      %p348 = scmp.lt.s32.totalorder %s345, 1
      %s349 = scalar_select %p348, %s345, 1
      %s350 = smul.addr %s347, 2
      %s351 = sadd.s32 %s349, %s350
      %s352 = smul.addr %s351, 4
      %s353 = scalar_lea.vmem %s7, %s352
      %s354 = smul.u32 2, %s24
      %v355 = vld [vmem:[%s333] sm:$0xff]
      %v356 = vld [vmem:[%s343] sm:$0xff]
      %v357 = vld [vmem:[%s2] sm:$0xff]
      %v358 = vld [vmem:[%s3] sm:$0xff]
      %v360 = vcombine.high %v356, %v356
      %vm361 = vcmask 31744
      %v363 = vsel %vm361, %v358, 0
      %vm365 = vcmask 1043456
      %v366 = vsel %vm365, %v356, 0
      %v368 = vsel %vm365, %v360, 0
      %370 = vmatprep.subr.mxu0 %v368
      %371 = vmatpush1.msra.mxu0 %v366
      %372 = vmatprep.subr.mxu0 0.0
      %373 = vmatpush1.msra.mxu0 0.0
      %374 = vmatprep.subr.mxu0 0.0
      %375 = vmatpush1.msra.mxu0 0.0
      %376 = vmatprep.subr.mxu0 0.0
      %377 = vmatpush1.msra.mxu0 0.0
      %378 = vmatprep.subr.mxu0 0.0
      %379 = vmatpush1.msra.mxu0 0.0
      %380 = vmatprep.subr.mxu0 0.0
      %381 = vmatpush1.msra.mxu0 0.0
      %382 = vmatprep.subr.mxu0 0.0
      %383 = vmatpush1.msra.mxu0 0.0
      %384 = vmatprep.subr.mxu0 0.0
      %385 = vmatpush1.msra.mxu0 0.0
      %386 = vmatprep.subr.mxu0 0.0
      %387 = vmatpush1.msra.mxu0 0.0
      %388 = vmatprep.subr.mxu0 0.0
      %389 = vmatpush1.msra.mxu0 0.0
      %390 = vmatprep.subr.mxu0 0.0
      %391 = vmatpush1.msra.mxu0 0.0
      %392 = vmatprep.subr.mxu0 0.0
      %393 = vmatpush1.msra.mxu0 0.0
      %394 = vmatprep.subr.mxu0 0.0
      %395 = vmatpush1.msra.mxu0 0.0
      %396 = vmatprep.subr.mxu0 0.0
      %397 = vmatpush1.msra.mxu0 0.0
      %398 = vmatprep.subr.mxu0 0.0
      %399 = vmatpush1.msra.mxu0 0.0
      %400 = vmatprep.subr.mxu0 0.0
      %401 = vmatpush1.msra.mxu0 0.0
      %402 = vmatprep.subr.mxu0 0.0
      %403 = vmatpush1.msra.mxu0 0.0
      %404 = vmatprep.subr.mxu0 0.0
      %405 = vmatpush1.msra.mxu0 0.0
      %406 = vmatprep.subr.mxu0 0.0
      %407 = vmatpush1.msra.mxu0 0.0
      %408 = vmatprep.subr.mxu0 0.0
      %409 = vmatpush1.msra.mxu0 0.0
      %410 = vmatprep.subr.mxu0 0.0
      %411 = vmatpush1.msra.mxu0 0.0
      %412 = vmatprep.subr.mxu0 0.0
      %413 = vmatpush1.msra.mxu0 0.0
      %414 = vmatprep.subr.mxu0 0.0
      %415 = vmatpush1.msra.mxu0 0.0
      %416 = vmatprep.subr.mxu0 0.0
      %417 = vmatpush1.msra.mxu0 0.0
      %418 = vmatprep.subr.mxu0 0.0
      %419 = vmatpush1.msra.mxu0 0.0
      %420 = vmatprep.subr.mxu0 0.0
      %421 = vmatpush1.msra.mxu0 0.0
      %422 = vmatprep.subr.mxu0 0.0
      %423 = vmatpush1.msra.mxu0 0.0
      %424 = vmatprep.subr.mxu0 0.0
      %425 = vmatpush1.msra.mxu0 0.0
      %426 = vmatprep.subr.mxu0 0.0
      %427 = vmatpush1.msra.mxu0 0.0
      %428 = vmatprep.subr.mxu0 0.0
      %429 = vmatpush1.msra.mxu0 0.0
      %430 = vmatprep.subr.mxu0 0.0
      %431 = vmatpush1.msra.mxu0 0.0
      %432 = vmatprep.subr.mxu0 0.0
      %433 = vmatpush1.msra.mxu0 0.0
      %434 = vmatprep.mubr.f32.mxu0 0.0
      %435 = vmatmul.mubr.f32.gmra.mrb[0].mxu0 %v363
      %v436 = vpop.f32.mrb[0].mxu0
      %v437 = vadd.f32 0.0, %v436
      %v438 = vpop.f32.mrb[0].mxu0
      %v439 = vadd.f32 0.0, %v438
      %440 = vdwg.mxu0
      %v442 = vcombine.high %v355, %v355
      %v444 = vsel %vm361, %v357, 0
      %v446 = vsel %vm365, %v355, 0
      %v448 = vsel %vm365, %v442, 0
      %450 = vmatprep.subr.mxu0 %v448
      %451 = vmatpush1.msra.mxu0 %v446
      %452 = vmatprep.subr.mxu0 0.0
      %453 = vmatpush1.msra.mxu0 0.0
      %454 = vmatprep.subr.mxu0 0.0
      %455 = vmatpush1.msra.mxu0 0.0
      %456 = vmatprep.subr.mxu0 0.0
      %457 = vmatpush1.msra.mxu0 0.0
      %458 = vmatprep.subr.mxu0 0.0
      %459 = vmatpush1.msra.mxu0 0.0
      %460 = vmatprep.subr.mxu0 0.0
      %461 = vmatpush1.msra.mxu0 0.0
      %462 = vmatprep.subr.mxu0 0.0
      %463 = vmatpush1.msra.mxu0 0.0
      %464 = vmatprep.subr.mxu0 0.0
      %465 = vmatpush1.msra.mxu0 0.0
      %466 = vmatprep.subr.mxu0 0.0
      %467 = vmatpush1.msra.mxu0 0.0
      %468 = vmatprep.subr.mxu0 0.0
      %469 = vmatpush1.msra.mxu0 0.0
      %470 = vmatprep.subr.mxu0 0.0
      %471 = vmatpush1.msra.mxu0 0.0
      %472 = vmatprep.subr.mxu0 0.0
      %473 = vmatpush1.msra.mxu0 0.0
      %474 = vmatprep.subr.mxu0 0.0
      %475 = vmatpush1.msra.mxu0 0.0
      %476 = vmatprep.subr.mxu0 0.0
      %477 = vmatpush1.msra.mxu0 0.0
      %478 = vmatprep.subr.mxu0 0.0
      %479 = vmatpush1.msra.mxu0 0.0
      %480 = vmatprep.subr.mxu0 0.0
      %481 = vmatpush1.msra.mxu0 0.0
      %482 = vmatprep.subr.mxu0 0.0
      %483 = vmatpush1.msra.mxu0 0.0
      %484 = vmatprep.subr.mxu0 0.0
      %485 = vmatpush1.msra.mxu0 0.0
      %486 = vmatprep.subr.mxu0 0.0
      %487 = vmatpush1.msra.mxu0 0.0
      %488 = vmatprep.subr.mxu0 0.0
      %489 = vmatpush1.msra.mxu0 0.0
      %490 = vmatprep.subr.mxu0 0.0
      %491 = vmatpush1.msra.mxu0 0.0
      %492 = vmatprep.subr.mxu0 0.0
      %493 = vmatpush1.msra.mxu0 0.0
      %494 = vmatprep.subr.mxu0 0.0
      %495 = vmatpush1.msra.mxu0 0.0
      %496 = vmatprep.subr.mxu0 0.0
      %497 = vmatpush1.msra.mxu0 0.0
      %498 = vmatprep.subr.mxu0 0.0
      %499 = vmatpush1.msra.mxu0 0.0
      %500 = vmatprep.subr.mxu0 0.0
      %501 = vmatpush1.msra.mxu0 0.0
      %502 = vmatprep.subr.mxu0 0.0
      %503 = vmatpush1.msra.mxu0 0.0
      %504 = vmatprep.subr.mxu0 0.0
      %505 = vmatpush1.msra.mxu0 0.0
      %506 = vmatprep.subr.mxu0 0.0
      %507 = vmatpush1.msra.mxu0 0.0
      %508 = vmatprep.subr.mxu0 0.0
      %509 = vmatpush1.msra.mxu0 0.0
      %510 = vmatprep.subr.mxu0 0.0
      %511 = vmatpush1.msra.mxu0 0.0
      %512 = vmatprep.subr.mxu0 0.0
      %513 = vmatpush1.msra.mxu0 0.0
      %514 = vmatprep.mubr.f32.mxu0 0.0
      %515 = vmatmul.mubr.f32.gmra.mrb[0].mxu0 %v444
      %v516 = vpop.f32.mrb[0].mxu0
      %v517 = vadd.f32 %v437, %v516
      %v518 = vpop.f32.mrb[0].mxu0
      %v519 = vadd.f32 %v439, %v518
      %520 = vdwg.mxu0
      %v521 = vld [vmem:[%s4] sm:$0xff]
      %523 = vset.pattern.permute.xlu0 0
      %524 = vperm.xlu0 %523, %v521
      %v525 = vpop.permute.xlu0 %524
      %v527 = vadd.f32 %v517, %v525
      %v528 = vadd.f32 %v519, %v525
      %v529 = vmax.f32 %v527, 0.0
      %v530 = vmax.f32 %v528, 0.0
      %v531 = vld [vmem:[%s5] sm:$0xff]
      %533 = vset.pattern.permute.xlu0 0
      %534 = vperm.xlu0 %533, %v531
      %v535 = vpop.permute.xlu0 %534
      %v537 = vmul.f32 %v529, %v535
      %v538 = vmul.f32 %v530, %v535
      %v539 = vrot.slane %v537, 4
      %v540 = vadd.f32 %v537, %v539
      %v541 = vrot.slane %v540, 2
      %v542 = vadd.f32 %v540, %v541
      %v543 = vrot.slane %v542, 1
      %v544 = vadd.f32 %v542, %v543
      %v545 = vrot.slane %v538, 4
      %v546 = vadd.f32 %v538, %v545
      %v547 = vrot.slane %v546, 2
      %v548 = vadd.f32 %v546, %v547
      %v549 = vrot.slane %v548, 1
      %v550 = vadd.f32 %v548, %v549
      %s551 = sld [smem:[#allocation2]]
      %v552 = vstv %s551
      %v553 = vadd.f32 %v544, %v552
      %v554 = vadd.f32 %v550, %v552
      %v555 = vxor.u32 %v553, 2147483648
      %v556 = vxor.u32 %v554, 2147483648
      %v557 = vmul.f32 %v555, 1.442695
      %v558 = vpow.pop %v557
      %v559 = vmul.f32 %v556, 1.442695
      %v560 = vpow.pop %v559
      %v561 = vadd.f32 %v558, 1.0
      %v562 = vadd.f32 %v560, 1.0
      %v563 = vrcp.pop %v561
      %v564 = vmul.f32 1.0, %v563
      %v565 = vrcp.pop %v562
      %v566 = vmul.f32 1.0, %v565
      %v568 = vmul.f32 %v564, %v356
      %v569 = vmul.f32 %v566, %v360
      %v572 = vcombine.low %v568, %v569
      %574 = vst [vmem:[%s353] sm:$0xff] %v572
      %s575 = smul.u32 2, %s24
      %p576 = scmp.lt.s32.totalorder %s23, 1
      %s577 = scalar_select %p576, %s23, 1
      %p578 = scmp.lt.s32.totalorder %s575, 1
      %s579 = scalar_select %p578, %s575, 1
      %s580 = smul.addr %s577, 2
      %s581 = sadd.s32 %s579, %s580
      %s582 = smul.addr %s581, 4
      %s583 = scalar_lea.vmem %s7, %s582
      // Predicated region
      $region49: #{attention_block.1} parent=47 // pred_check
        %p584 = pneg %p212
      $region50: #{attention_block.1} parent=47 // pred_check_branch
        %586 = sbr.rel (%p584) target = $region52
      $region51: #{attention_block.1} parent=47 // pred_region
        %s587 = smul.u32 2, %s24
      $region52: #{attention_block.1} parent=47 // pred_fallthru
        _
    $region48: #{attention_block.1} parent=5 // pred_fallthru
      _
    %p588 = scmp.le.s32.totalorder 2, %s14
    // Predicated region
    $region53: #{attention_block.1} parent=5 // pred_check
      %p589 = pneg %p588
    $region54: #{attention_block.1} parent=5 // pred_check_branch
      %591 = sbr.rel (%p589) target = $region56
    $region55: #{attention_block.1} parent=5 // pred_region
      %s592 = ssub.s32 %s14, 2
      // Predicated region
      $region57: #{attention_block.1} parent=55 // pred_check
        %p593 = pneg %p218
      $region58: #{attention_block.1} parent=55 // pred_check_branch
        %595 = sbr.rel (%p593) target = $region60
      $region59: #{attention_block.1} parent=55 // pred_region
        %s596 = smul.u32 2, %s26
        %p597 = scmp.lt.s32.totalorder %s25, 1
        %s598 = scalar_select %p597, %s25, 1
        %p599 = scmp.lt.s32.totalorder %s596, 1
        %s600 = scalar_select %p599, %s596, 1
        %s601 = smul.addr %s598, 2
        %s602 = sadd.s32 %s600, %s601
        %s603 = smul.addr %s602, 4
        %s604 = scalar_lea.vmem %s7, %s603
      $region60: #{attention_block.1} parent=55 // pred_fallthru
        _
    $region56: #{attention_block.1} parent=5 // pred_fallthru
      _
  $region6: #{attention_block.1} parent=0 // loop_footer
    %s18 = sadd.s32 1, %s14
  $region7: #{attention_block.1} parent=0 // loop_footer_branch
    %13 = sbr.rel target = $region3
  $region8: #{attention_block.1} parent=0 // loop_exit
    _

</llo_original>
